<compile_context>
chip_gen: v7x
topology: tpu7x:2x2x1
jax: 0.10.0
libtpu: 0.0.40
codegen_flags: <defaults>
</compile_context>

<pallas_src>
import math

import jax
import jax.numpy as jnp
from jax.experimental import pallas as pl
from jax.experimental.pallas import tpu as pltpu


# ----------------------------------------------------------------------------
# Small helpers
# ----------------------------------------------------------------------------
def _round_up(x, m):
    return ((x + m - 1) // m) * m


_VMEM_BUDGET = 48 * 1024 * 1024   # conservative: v7x physical VMEM is 64 MiB


def _plan_tiles(M, row_bytes_in, row_bytes_out, fixed_bytes, compute_dtype):
    """Pick a sublane-aligned row tile:
       * large (512 f32 / 1024 bf16 rows) to amortize the ~0.35us/step pipeline
         overhead and keep outputs lane-dense,
       * small enough that double-buffered row blocks + the resident weight fit
         the VMEM budget.
    Returns (tm, estimated resident VMEM bytes)."""
    base = 1024 if jnp.dtype(compute_dtype) == jnp.dtype(jnp.bfloat16) else 512
    tm = min(base, _round_up(M, 8))
    need = lambda t: fixed_bytes + 2 * t * (row_bytes_in + row_bytes_out)
    while tm > 8 and need(tm) > _VMEM_BUDGET:
        tm = max(8, _round_up(tm // 2, 8))
    # TODO(synk): if the resident weight alone exceeds the budget (very large E),
    # add a K/N grid axis with an f32 accumulator instead of keeping it resident.
    return tm, need(tm)


def _compiler_params(dim_sem, vmem_bytes_needed):
    kw = dict(dimension_semantics=dim_sem)
    # Default scoped VMEM limit: 16 MiB (v5e) / 32 MiB (v6e, v7x).  Raise only
    # when the estimated resident footprint needs it, with headroom.
    if vmem_bytes_needed > 16 * 1024 * 1024:
        kw["vmem_limit_bytes"] = min(int(vmem_bytes_needed * 1.25), 100 * 1024 * 1024)
    return pltpu.CompilerParams(**kw)


# ----------------------------------------------------------------------------
# Kernel 1: fused path   q,k,v = split(x @ W.T + b)    (query is key)
#   x: (tm, E)   wt: (E, 3E) (host pre-transposed, resident)   b: (1, 3E) f32
# ----------------------------------------------------------------------------
def _fused_qkv_kernel(x_ref, wt_ref, b_ref, q_ref, k_ref, v_ref):
    acc = jnp.dot(x_ref[...], wt_ref[...], preferred_element_type=jnp.float32)
    acc = acc + b_ref[...]                       # (1, 3E) broadcasts, f32 epilogue
    E = q_ref.shape[-1]
    q_ref[...] = acc[:, :E].astype(q_ref.dtype)
    k_ref[...] = acc[:, E:2 * E].astype(k_ref.dtype)
    v_ref[...] = acc[:, 2 * E:].astype(v_ref.dtype)


def _fused_qkv_pallas(x2d, wt, b2d, out_dtype, compute_dtype):
    M, E = x2d.shape
    three_e = wt.shape[1]
    cbytes = jnp.dtype(compute_dtype).itemsize
    obytes = jnp.dtype(out_dtype).itemsize
    fixed = 2 * (E * three_e * cbytes + three_e * 4)
    tm, vmem_need = _plan_tiles(M, E * cbytes, 3 * E * obytes, fixed, compute_dtype)
    grid = (pl.cdiv(M, tm),)

    q, k, v = pl.pallas_call(
        _fused_qkv_kernel,
        out_shape=(jax.ShapeDtypeStruct((M, E), out_dtype),) * 3,
        grid_spec=pltpu.PrefetchScalarGridSpec(
            num_scalar_prefetch=0,
            grid=grid,
            in_specs=[
                pl.BlockSpec((tm, E), lambda i: (i, 0)),
                pl.BlockSpec((E, three_e), lambda i: (0, 0)),   # weight: resident
                pl.BlockSpec((1, three_e), lambda i: (0, 0)),   # bias:   resident
            ],
            out_specs=[
                pl.BlockSpec((tm, E), lambda i: (i, 0)),
                pl.BlockSpec((tm, E), lambda i: (i, 0)),
                pl.BlockSpec((tm, E), lambda i: (i, 0)),
            ],
        ),
        compiler_params=_compiler_params(("parallel",), vmem_need),
    )(x2d.astype(compute_dtype), wt.astype(compute_dtype), b2d)
    return q, k, v


# ----------------------------------------------------------------------------
# Kernel 2: split path (distinct q/k/v, identical shape) in ONE pallas_call
#   grid = (M//tm,);   three row-tiled inputs, three resident (E, E) weights,
#   three (1, E) f32 biases, three lane-dense outputs.  No host-side stacking.
# ----------------------------------------------------------------------------
def _split_qkv_kernel(q_ref, k_ref, v_ref, wq_ref, wk_ref, wv_ref,
                      bq_ref, bk_ref, bv_ref, oq_ref, ok_ref, ov_ref):
    def proj(x_ref, w_ref, b_ref, o_ref):
        acc = jnp.dot(x_ref[...], w_ref[...], preferred_element_type=jnp.float32)
        o_ref[...] = (acc + b_ref[...]).astype(o_ref.dtype)

    proj(q_ref, wq_ref, bq_ref, oq_ref)
    proj(k_ref, wk_ref, bk_ref, ok_ref)
    proj(v_ref, wv_ref, bv_ref, ov_ref)


def _split_qkv_pallas(q2d, k2d, v2d, wqt, wkt, wvt, bq, bk, bv,
                      out_dtype, compute_dtype):
    M, E = q2d.shape
    cbytes = jnp.dtype(compute_dtype).itemsize
    obytes = jnp.dtype(out_dtype).itemsize
    fixed = 2 * (3 * E * E * cbytes + 3 * E * 4)
    tm, vmem_need = _plan_tiles(M, 3 * E * cbytes, 3 * E * obytes, fixed, compute_dtype)
    grid = (pl.cdiv(M, tm),)

    cast = lambda a: a.astype(compute_dtype)
    row_spec = pl.BlockSpec((tm, E), lambda i: (i, 0))
    w_spec = pl.BlockSpec((E, E), lambda i: (0, 0))
    b_spec = pl.BlockSpec((1, E), lambda i: (0, 0))

    return pl.pallas_call(
        _split_qkv_kernel,
        out_shape=(jax.ShapeDtypeStruct((M, E), out_dtype),) * 3,
        grid_spec=pltpu.PrefetchScalarGridSpec(
            num_scalar_prefetch=0,
            grid=grid,
            in_specs=[row_spec, row_spec, row_spec,
                      w_spec, w_spec, w_spec,
                      b_spec, b_spec, b_spec],
            out_specs=[row_spec, row_spec, row_spec],
        ),
        compiler_params=_compiler_params(("parallel",), vmem_need),
    )(cast(q2d), cast(k2d), cast(v2d), cast(wqt), cast(wkt), cast(wvt), bq, bk, bv)


# ----------------------------------------------------------------------------
# Kernel 3: single projection (fallback for ragged shapes / separate weights)
# ----------------------------------------------------------------------------
def _single_proj_kernel(x_ref, wt_ref, b_ref, o_ref):
    acc = jnp.dot(x_ref[...], wt_ref[...], preferred_element_type=jnp.float32)
    o_ref[...] = (acc + b_ref[...]).astype(o_ref.dtype)


def _single_proj_pallas(x2d, wt, b2d, out_dtype, compute_dtype):
    M, K = x2d.shape
    N = wt.shape[1]
    cbytes = jnp.dtype(compute_dtype).itemsize
    obytes = jnp.dtype(out_dtype).itemsize
    fixed = 2 * (K * N * cbytes + N * 4)
    tm, vmem_need = _plan_tiles(M, K * cbytes, N * obytes, fixed, compute_dtype)
    grid = (pl.cdiv(M, tm),)

    return pl.pallas_call(
        _single_proj_kernel,
        out_shape=jax.ShapeDtypeStruct((M, N), out_dtype),
        grid_spec=pltpu.PrefetchScalarGridSpec(
            num_scalar_prefetch=0,
            grid=grid,
            in_specs=[
                pl.BlockSpec((tm, K), lambda i: (i, 0)),
                pl.BlockSpec((K, N), lambda i: (0, 0)),
                pl.BlockSpec((1, N), lambda i: (0, 0)),
            ],
            out_specs=pl.BlockSpec((tm, N), lambda i: (i, 0)),
        ),
        compiler_params=_compiler_params(("parallel",), vmem_need),
    )(x2d.astype(compute_dtype), wt.astype(compute_dtype), b2d)


# ----------------------------------------------------------------------------
# Parameter construction (mirrors InProjContainer.__init__ / _reset_parameters)
# ----------------------------------------------------------------------------
def xavier_uniform(key, shape, gain):
    fan_out, fan_in = shape            # torch convention: [out_features, in_features]
    a = gain * math.sqrt(6.0 / float(fan_in + fan_out))
    return jax.random.uniform(key, shape, jnp.float32, minval=-a, maxval=a)


def small_init(key, shape, gain=1.0):
    fan_out, fan_in = shape
    std = gain * math.sqrt(2.0 / float(fan_in + 4 * fan_out))
    a = math.sqrt(3.0) * std
    return jax.random.uniform(key, shape, jnp.float32, minval=-a, maxval=a)


def make_in_proj_params(key, out_features, bias=True, use_small_init=False):
    """same_dimensions branch: single (3E, E) weight, gain = 1/sqrt(2)."""
    init = small_init if use_small_init else xavier_uniform
    w = init(key, (3 * out_features, out_features), gain=1.0 / math.sqrt(2.0))
    b = jnp.zeros((3 * out_features,), jnp.float32) if bias else None
    return w, b


# ----------------------------------------------------------------------------
# Forward: same_dimensions / in_proj_weight case (matches the torch module)
# ----------------------------------------------------------------------------
def in_proj_forward(query, key, value, in_proj_weight, in_proj_bias, out_features,
                    compute_dtype=None):
    B, S, E = query.shape
    out_dtype = query.dtype
    if compute_dtype is None:
        compute_dtype = query.dtype   # pass jnp.bfloat16 for bf16-native MXUs

    bias = (in_proj_bias if in_proj_bias is not None
            else jnp.zeros((3 * out_features,), jnp.float32)).astype(jnp.float32)

    # Pre-transpose the static weight ONCE on the host: contraction lands on the
    # last dim of x and first dim of wt, so no in-kernel XLU transpose.
    wt = in_proj_weight.T                                   # [E, 3E]

    if query is key:
        # torch: id(query) == id(key) -> fused qkv from `query`, `value` ignored.
        x2d = query.reshape(B * S, E)
        q, k, v = _fused_qkv_pallas(x2d, wt, bias.reshape(1, -1),
                                    out_dtype, compute_dtype)
        rs = lambda t: t.reshape(B, S, out_features)
        return rs(q), rs(k), rs(v)

    wqt = wt[:, :out_features]
    wkt = wt[:, out_features:2 * out_features]
    wvt = wt[:, 2 * out_features:]
    bq = bias[:out_features].reshape(1, -1)
    bk = bias[out_features:2 * out_features].reshape(1, -1)
    bv = bias[2 * out_features:].reshape(1, -1)

    if query.shape == key.shape == value.shape:
        # distinct q/k/v, same shape: one pallas_call, no host-side stacking copy
        q, k, v = _split_qkv_pallas(query.reshape(B * S, E), key.reshape(B * S, E),
                                    value.reshape(B * S, E),
                                    wqt, wkt, wvt, bq, bk, bv,
                                    out_dtype, compute_dtype)
        rs = lambda t: t.reshape(B, S, out_features)
        return rs(q), rs(k), rs(v)

    # fallback: q/k/v have different shapes (e.g. cross-attention seq lengths)
    def proj(x, w, b):
        Bx, Sx, Ex = x.shape
        return _single_proj_pallas(x.reshape(Bx * Sx, Ex), w, b,
                                   out_dtype, compute_dtype).reshape(Bx, Sx, out_features)

    return proj(query, wqt, bq), proj(key, wkt, bk), proj(value, wvt, bv)


# ----------------------------------------------------------------------------
# Forward: non-same-dimensions case (separate q/k/v_proj_weight).
# Faithful to the torch module: out = x @ W (NO transpose) + bias chunk.
# ----------------------------------------------------------------------------
def in_proj_forward_separate(query, key, value, q_w, k_w, v_w, in_proj_bias,
                             out_features, compute_dtype=None):
    out_dtype = query.dtype
    if compute_dtype is None:
        compute_dtype = query.dtype

    if in_proj_bias is not None:
        bias = in_proj_bias.astype(jnp.float32)
        bs = (bias[:out_features], bias[out_features:2 * out_features],
              bias[2 * out_features:])
    else:
        bs = (None, None, None)

    outs = []
    for x, w, b in zip((query, key, value), (q_w, k_w, v_w), bs):
        Bx, Sx, Ex = x.shape
        N = w.shape[1]
        b2d = (b if b is not None else jnp.zeros((N,), jnp.float32)).reshape(1, N)
        o = _single_proj_pallas(x.reshape(Bx * Sx, Ex), w, b2d,
                                out_dtype, compute_dtype)
        outs.append(o.reshape(Bx, Sx, N))
    return tuple(outs)


# ----------------------------------------------------------------------------
# Demo / self-check
# ----------------------------------------------------------------------------
if __name__ == "__main__":
    B, S, E = 2, 8, 32      # batch, seq, embed (in_features == out_features == E)

    root = jax.random.PRNGKey(0)
    k_w, k_b, k_q, k_k, k_v = jax.random.split(root, 5)

    in_proj_weight, _ = make_in_proj_params(k_w, E, bias=True)
    # use a non-zero bias so the bias epilogue is actually exercised
    in_proj_bias = 0.1 * jax.random.normal(k_b, (3 * E,), jnp.float32)

    # --- fused self-attention path (query is key), f32 compute ---
    x = jax.random.normal(k_q, (B, S, E), jnp.float32)
    q, k, v = in_proj_forward(x, x, x, in_proj_weight, in_proj_bias, E)
    jax.block_until_ready((q, k, v))

    qkv_ref = x.reshape(-1, E) @ in_proj_weight.T + in_proj_bias
    qkv_ref = qkv_ref.reshape(B, S, 3 * E)
    assert jnp.allclose(q, qkv_ref[..., :E], atol=1e-4)
    assert jnp.allclose(k, qkv_ref[..., E:2 * E], atol=1e-4)
    assert jnp.allclose(v, qkv_ref[..., 2 * E:], atol=1e-4)

    # --- fused path with query is key but a different value object ---
    value_other = jax.random.normal(k_v, (B, S, E), jnp.float32)
    q1, k1, v1 = in_proj_forward(x, x, value_other, in_proj_weight, in_proj_bias, E)
    jax.block_until_ready((q1, k1, v1))
    assert jnp.allclose(v1, qkv_ref[..., 2 * E:], atol=1e-4)   # value ignored, as in torch

    # --- split path (distinct query / key / value, same shape) ---
    query = x
    key_t = jax.random.normal(k_k, (B, S, E), jnp.float32)
    value = value_other
    q2, k2, v2 = in_proj_forward(query, key_t, value, in_proj_weight, in_proj_bias, E)
    jax.block_until_ready((q2, k2, v2))

    q2_ref = query @ in_proj_weight[:E].T + in_proj_bias[:E]
    k2_ref = key_t @ in_proj_weight[E:2 * E].T + in_proj_bias[E:2 * E]
    v2_ref = value @ in_proj_weight[2 * E:].T + in_proj_bias[2 * E:]
    assert jnp.allclose(q2, q2_ref, atol=1e-4)
    assert jnp.allclose(k2, k2_ref, atol=1e-4)
    assert jnp.allclose(v2, v2_ref, atol=1e-4)

    # --- fallback path: key/value with a different sequence length ---
    key_s = jax.random.normal(k_k, (B, 4, E), jnp.float32)
    val_s = jax.random.normal(k_v, (B, 4, E), jnp.float32)
    q3, k3, v3 = in_proj_forward(query, key_s, val_s, in_proj_weight, in_proj_bias, E)
    jax.block_until_ready((q3, k3, v3))
    assert jnp.allclose(q3, q2_ref, atol=1e-4)
    assert jnp.allclose(k3, key_s @ in_proj_weight[E:2 * E].T + in_proj_bias[E:2 * E], atol=1e-4)
    assert jnp.allclose(v3, val_s @ in_proj_weight[2 * E:].T + in_proj_bias[2 * E:], atol=1e-4)

    # --- bf16 compute path (operands bf16, f32 MXU accumulation) ---
    qb, kb, vb = in_proj_forward(x, x, x, in_proj_weight, in_proj_bias, E,
                                 compute_dtype=jnp.bfloat16)
    jax.block_until_ready((qb, kb, vb))
    x_b = x.astype(jnp.bfloat16).astype(jnp.float32)
    w_b = in_proj_weight.astype(jnp.bfloat16).astype(jnp.float32)
    qkv_b = (x_b.reshape(-1, E) @ w_b.T + in_proj_bias).reshape(B, S, 3 * E)
    assert jnp.allclose(qb, qkv_b[..., :E], atol=1e-2, rtol=1e-2)
    assert jnp.allclose(kb, qkv_b[..., E:2 * E], atol=1e-2, rtol=1e-2)
    assert jnp.allclose(vb, qkv_b[..., 2 * E:], atol=1e-2, rtol=1e-2)

    # --- non-same-dimensions config: separate q/k/v projection weights ---
    kq_w, kk_w, kv_w = jax.random.split(k_w, 3)
    q_w = xavier_uniform(kq_w, (E, E), gain=1.0)
    k_w2 = xavier_uniform(kk_w, (E, E), gain=1.0)
    v_w2 = xavier_uniform(kv_w, (E, E), gain=1.0)
    q4, k4, v4 = in_proj_forward_separate(query, key_t, value, q_w, k_w2, v_w2,
                                          in_proj_bias, E)
    jax.block_until_ready((q4, k4, v4))
    assert jnp.allclose(q4, query @ q_w + in_proj_bias[:E], atol=1e-4)
    assert jnp.allclose(k4, key_t @ k_w2 + in_proj_bias[E:2 * E], atol=1e-4)
    assert jnp.allclose(v4, value @ v_w2 + in_proj_bias[2 * E:], atol=1e-4)

    print("KERNEL_OK")
</pallas_src>

<mosaic_0001>
module attributes {stable_mosaic.version = 11 : i64} {
  func.func @_fused_qkv_kernel(%arg0: i32, %arg1: memref<16x32xf32, #tpu.memory_space<vmem>>, %arg2: memref<32x96xf32, #tpu.memory_space<vmem>>, %arg3: memref<1x96xf32, #tpu.memory_space<vmem>>, %arg4: memref<16x32xf32, #tpu.memory_space<vmem>>, %arg5: memref<16x32xf32, #tpu.memory_space<vmem>>, %arg6: memref<16x32xf32, #tpu.memory_space<vmem>>) attributes {dimension_semantics = [#tpu.dimension_semantics<parallel>], iteration_bounds = array<i64: 1>, scalar_prefetch = 0 : i64, scratch_operands = 0 : i64, tpu.core_type = #tpu.core_type<tc>, window_params = [{transform_indices = @transform_0, window_bounds = array<i64: 16, 32>}, {pipeline_mode = #tpu.pipeline_mode<synchronous>, transform_indices = @transform_1, window_bounds = array<i64: 32, 96>}, {pipeline_mode = #tpu.pipeline_mode<synchronous>, transform_indices = @transform_2, window_bounds = array<i64: 1, 96>}, {transform_indices = @transform_3, window_bounds = array<i64: 16, 32>}, {transform_indices = @transform_4, window_bounds = array<i64: 16, 32>}, {transform_indices = @transform_5, window_bounds = array<i64: 16, 32>}]} {
    %c0 = arith.constant 0 : index
    %c0_0 = arith.constant 0 : index
    %0 = vector.load %arg1[%c0, %c0_0] : memref<16x32xf32, #tpu.memory_space<vmem>>, vector<16x32xf32>
    %c0_1 = arith.constant 0 : index
    %c0_2 = arith.constant 0 : index
    %1 = vector.load %arg2[%c0_1, %c0_2] : memref<32x96xf32, #tpu.memory_space<vmem>>, vector<32x96xf32>
    %cst = arith.constant dense<0.000000e+00> : vector<16x96xf32>
    %2 = tpu.matmul %0, %1, %cst {dimension_numbers = #tpu.dot_dimension_numbers<[1], [0], [0], [1], [0, 0, 1, 1], [], []>} : vector<16x32xf32>, vector<32x96xf32>, vector<16x96xf32> -> vector<16x96xf32>
    %c0_3 = arith.constant 0 : index
    %c0_4 = arith.constant 0 : index
    %3 = vector.load %arg3[%c0_3, %c0_4] : memref<1x96xf32, #tpu.memory_space<vmem>>, vector<1x96xf32>
    %4 = vector.broadcast %3 : vector<1x96xf32> to vector<16x96xf32>
    %5 = arith.addf %2, %4 : vector<16x96xf32>
    %6 = vector.extract_strided_slice %5 {offsets = [0, 0], sizes = [16, 32], strides = [1, 1]} : vector<16x96xf32> to vector<16x32xf32>
    %c0_5 = arith.constant 0 : index
    %c0_6 = arith.constant 0 : index
    %7 = vector.load %arg4[%c0_5, %c0_6] : memref<16x32xf32, #tpu.memory_space<vmem>>, vector<16x32xf32>
    tpu.vector_store %arg4[%c0_5, %c0_6], %6 {strides = array<i32>} : memref<16x32xf32, #tpu.memory_space<vmem>>, vector<16x32xf32>,
    %8 = vector.extract_strided_slice %5 {offsets = [0, 32], sizes = [16, 32], strides = [1, 1]} : vector<16x96xf32> to vector<16x32xf32>
    %c0_7 = arith.constant 0 : index
    %c0_8 = arith.constant 0 : index
    %9 = vector.load %arg5[%c0_7, %c0_8] : memref<16x32xf32, #tpu.memory_space<vmem>>, vector<16x32xf32>
    tpu.vector_store %arg5[%c0_7, %c0_8], %8 {strides = array<i32>} : memref<16x32xf32, #tpu.memory_space<vmem>>, vector<16x32xf32>,
    %10 = vector.extract_strided_slice %5 {offsets = [0, 64], sizes = [16, 32], strides = [1, 1]} : vector<16x96xf32> to vector<16x32xf32>
    %c0_9 = arith.constant 0 : index
    %c0_10 = arith.constant 0 : index
    %11 = vector.load %arg6[%c0_9, %c0_10] : memref<16x32xf32, #tpu.memory_space<vmem>>, vector<16x32xf32>
    tpu.vector_store %arg6[%c0_9, %c0_10], %10 {strides = array<i32>} : memref<16x32xf32, #tpu.memory_space<vmem>>, vector<16x32xf32>,
    return
  }
  func.func @transform_0(%arg0: i32) -> (i32, i32) {
    %c0_i32 = arith.constant 0 : i32
    %c0_i32_0 = arith.constant 0 : i32
    return %arg0, %c0_i32 : i32, i32
  }
  func.func @transform_1(%arg0: i32) -> (i32, i32) {
    %c0_i32 = arith.constant 0 : i32
    %c0_i32_0 = arith.constant 0 : i32
    %c0_i32_1 = arith.constant 0 : i32
    return %c0_i32, %c0_i32_0 : i32, i32
  }
  func.func @transform_2(%arg0: i32) -> (i32, i32) {
    %c0_i32 = arith.constant 0 : i32
    %c0_i32_0 = arith.constant 0 : i32
    %c0_i32_1 = arith.constant 0 : i32
    return %c0_i32, %c0_i32_0 : i32, i32
  }
  func.func @transform_3(%arg0: i32) -> (i32, i32) {
    %c0_i32 = arith.constant 0 : i32
    %c0_i32_0 = arith.constant 0 : i32
    return %arg0, %c0_i32 : i32, i32
  }
  func.func @transform_4(%arg0: i32) -> (i32, i32) {
    %c0_i32 = arith.constant 0 : i32
    %c0_i32_0 = arith.constant 0 : i32
    return %arg0, %c0_i32 : i32, i32
  }
  func.func @transform_5(%arg0: i32) -> (i32, i32) {
    %c0_i32 = arith.constant 0 : i32
    %c0_i32_0 = arith.constant 0 : i32
    return %arg0, %c0_i32 : i32, i32
  }
}

</mosaic_0001>

<llo_original>
// kernel: tpu_custom_call.1
$region0: #{tpu_custom_call.1}
  #allocation0 [shape = 'u32[]', space=smem, size = 0x4, offset = 0x4, fixed_abs, tag = 'smem constant byte address 0x4 - core index']
  #allocation1 [shape = 'u32[144,128]{1,0:T(1,128)}', space=vmem, size = 0x12000, scoped, tag = 'internal scratch']
  %s0 = inlined_call_operand.hbm [shape: f32[16,32], index: 0, kind: input, shape index: {}]
  %s1 = inlined_call_operand.hbm [shape: f32[32,96], index: 1, kind: input, shape index: {}]
  %s2 = inlined_call_operand.vmem [shape: f32[1,96], index: 2, kind: input, shape index: {}]
  %s3 = inlined_call_operand.hbm [shape: f32[16,32], index: 3, kind: output, shape index: {0}]
  %s4 = inlined_call_operand.hbm [shape: f32[16,32], index: 4, kind: output, shape index: {1}]
  %s5 = inlined_call_operand.hbm [shape: f32[16,32], index: 5, kind: output, shape index: {2}]
  %6 = xla_tuple %s3, %s4, %s5
  %s7 = sld [smem:[#allocation0]]
  $region46: #{tpu_custom_call.1} parent=0
    _
  %s9 = ssub.s32 1, %s7
  %s10 = scalar_select 0, %s9, %s7
  $region1: #{tpu_custom_call.1} parent=0
    #allocation2 [shape = 'u8[8192]{0}', space=vmem, size = 0x2000, scoped, tag = 'input window, operand 0, single buffered']
    #allocation3 [shape = 's32[1]{0}', space=sflag, size = 0x4, scoped, tag = 'scoped memory for tpu_custom_call.1']
    #allocation4 [shape = 's32[1]{0}', space=sflag, size = 0x4, scoped, tag = 'scoped memory for tpu_custom_call.1']
    #allocation5 [shape = 'u8[16384]{0}', space=vmem, size = 0x4000, scoped, tag = 'input window, operand 1, single buffered']
    #allocation6 [shape = 's32[1]{0}', space=sflag, size = 0x4, scoped, tag = 'scoped memory for tpu_custom_call.1']
    #allocation7 [shape = 'u8[8192]{0}', space=vmem, size = 0x2000, scoped, tag = 'output window, operand 0, single buffered']
    #allocation8 [shape = 'u8[8192]{0}', space=vmem, size = 0x2000, scoped, tag = 'output window, operand 1, single buffered']
    #allocation9 [shape = 's32[1]{0}', space=sflag, size = 0x4, scoped, tag = 'scoped memory for tpu_custom_call.1']
    #allocation10 [shape = 'u8[8192]{0}', space=vmem, size = 0x2000, scoped, tag = 'output window, operand 2, single buffered']
    %11 = vsyncpa [#allocation3], 0
    %12 = vsyncpa [#allocation6], 0
    %13 = vsyncpa [#allocation4], 0
    %14 = vsyncpa [#allocation9], 0
    // Predicated region
    $region2: #{tpu_custom_call.1} parent=1 // pred_check
      _
    $region3: #{tpu_custom_call.1} parent=1 // pred_check_branch
      %16 = sbr.rel (0) target = $region5
    $region4: #{tpu_custom_call.1} parent=1 // pred_region
      %s18 = ssub.s32 256, 256
      %19 = vsyncadd [#allocation3], %s18
      %s20 = sshll.u32 [#allocation2], 4
      %s21 = int_to_ptr.vmem [resolvable:$true] %s20
      %26 = dma.hbm_to_vmem [thread:$0]  %s0, 256, %s21, [#allocation3], 128, 128, 8
    $region5: #{tpu_custom_call.1} parent=1 // pred_fallthru
      _
    // Predicated region
    $region6: #{tpu_custom_call.1} parent=1 // pred_check
      _
    $region7: #{tpu_custom_call.1} parent=1 // pred_check_branch
      %28 = sbr.rel (0) target = $region9
    $region8: #{tpu_custom_call.1} parent=1 // pred_region
      %s30 = ssub.s32 512, 512
      %31 = vsyncadd [#allocation6], %s30
      %s32 = sshll.u32 [#allocation5], 4
      %s33 = int_to_ptr.vmem [resolvable:$true] %s32
      %38 = dma.hbm_to_vmem [thread:$0]  %s1, 512, %s33, [#allocation6], 128, 128, 8
    $region9: #{tpu_custom_call.1} parent=1 // pred_fallthru
      _
    // Predicated region
    $region10: #{tpu_custom_call.1} parent=1 // pred_check
      _
    $region11: #{tpu_custom_call.1} parent=1 // pred_check_branch
      %40 = sbr.rel (0) target = $region13
    $region12: #{tpu_custom_call.1} parent=1 // pred_region
      _
    $region13: #{tpu_custom_call.1} parent=1 // pred_fallthru
      _
    // Predicated region
    $region14: #{tpu_custom_call.1} parent=1 // pred_check
      _
    $region15: #{tpu_custom_call.1} parent=1 // pred_check_branch
      %42 = sbr.rel (0) target = $region17
    $region16: #{tpu_custom_call.1} parent=1 // pred_region
      %43 = dma.done [#allocation3], 256
    $region17: #{tpu_custom_call.1} parent=1 // pred_fallthru
      _
    // Predicated region
    $region18: #{tpu_custom_call.1} parent=1 // pred_check
      _
    $region19: #{tpu_custom_call.1} parent=1 // pred_check_branch
      %45 = sbr.rel (0) target = $region21
    $region20: #{tpu_custom_call.1} parent=1 // pred_region
      %46 = dma.done [#allocation6], 512
    $region21: #{tpu_custom_call.1} parent=1 // pred_fallthru
      _
    %v47 = vld [vmem:[#allocation2] sm:$0xff]
    %v48 = vld [vmem:[#allocation2 + $0x8] sm:$0xff]
    %v49 = vld [vmem:[#allocation5] sm:$0xff]
    %v50 = vld [vmem:[#allocation5 + $0x8] sm:$0xff]
    %v51 = vld [vmem:[#allocation5 + $0x10] sm:$0xff]
    %v52 = vld [vmem:[#allocation5 + $0x18] sm:$0xff]
    %v53 = vld [vmem:[%s2] sm:$0x1]
    %v55 = vlaneseq
    %v56 = vshrl.u32 %v55, 7
    %v57 = vsub.s32 0, %v56
    %v58 = vrot.slane %v53, %v57
    %vm60 = vcmask 261120
    %v62 = vsel %vm60, %v47, 0
    %v65 = vsel %vm60, %v48, 0
    %67 = vmatprep.subr.mxu0 0.0
    %68 = vmatpush1.msra.mxu0 %v49
    %69 = vmatprep.subr.mxu0 0.0
    %70 = vmatpush1.msra.mxu0 %v50
    %71 = vmatprep.subr.mxu0 0.0
    %72 = vmatpush1.msra.mxu0 %v51
    %73 = vmatprep.subr.mxu0 0.0
    %74 = vmatpush1.msra.mxu0 %v52
    %75 = vmatprep.subr.mxu0 0.0
    %76 = vmatpush1.msra.mxu0 0.0
    %77 = vmatprep.subr.mxu0 0.0
    %78 = vmatpush1.msra.mxu0 0.0
    %79 = vmatprep.subr.mxu0 0.0
    %80 = vmatpush1.msra.mxu0 0.0
    %81 = vmatprep.subr.mxu0 0.0
    %82 = vmatpush1.msra.mxu0 0.0
    %83 = vmatprep.subr.mxu0 0.0
    %84 = vmatpush1.msra.mxu0 0.0
    %85 = vmatprep.subr.mxu0 0.0
    %86 = vmatpush1.msra.mxu0 0.0
    %87 = vmatprep.subr.mxu0 0.0
    %88 = vmatpush1.msra.mxu0 0.0
    %89 = vmatprep.subr.mxu0 0.0
    %90 = vmatpush1.msra.mxu0 0.0
    %91 = vmatprep.subr.mxu0 0.0
    %92 = vmatpush1.msra.mxu0 0.0
    %93 = vmatprep.subr.mxu0 0.0
    %94 = vmatpush1.msra.mxu0 0.0
    %95 = vmatprep.subr.mxu0 0.0
    %96 = vmatpush1.msra.mxu0 0.0
    %97 = vmatprep.subr.mxu0 0.0
    %98 = vmatpush1.msra.mxu0 0.0
    %99 = vmatprep.subr.mxu0 0.0
    %100 = vmatpush1.msra.mxu0 0.0
    %101 = vmatprep.subr.mxu0 0.0
    %102 = vmatpush1.msra.mxu0 0.0
    %103 = vmatprep.subr.mxu0 0.0
    %104 = vmatpush1.msra.mxu0 0.0
    %105 = vmatprep.subr.mxu0 0.0
    %106 = vmatpush1.msra.mxu0 0.0
    %107 = vmatprep.subr.mxu0 0.0
    %108 = vmatpush1.msra.mxu0 0.0
    %109 = vmatprep.subr.mxu0 0.0
    %110 = vmatpush1.msra.mxu0 0.0
    %111 = vmatprep.subr.mxu0 0.0
    %112 = vmatpush1.msra.mxu0 0.0
    %113 = vmatprep.subr.mxu0 0.0
    %114 = vmatpush1.msra.mxu0 0.0
    %115 = vmatprep.subr.mxu0 0.0
    %116 = vmatpush1.msra.mxu0 0.0
    %117 = vmatprep.subr.mxu0 0.0
    %118 = vmatpush1.msra.mxu0 0.0
    %119 = vmatprep.subr.mxu0 0.0
    %120 = vmatpush1.msra.mxu0 0.0
    %121 = vmatprep.subr.mxu0 0.0
    %122 = vmatpush1.msra.mxu0 0.0
    %123 = vmatprep.subr.mxu0 0.0
    %124 = vmatpush1.msra.mxu0 0.0
    %125 = vmatprep.subr.mxu0 0.0
    %126 = vmatpush1.msra.mxu0 0.0
    %127 = vmatprep.subr.mxu0 0.0
    %128 = vmatpush1.msra.mxu0 0.0
    %129 = vmatprep.subr.mxu0 0.0
    %130 = vmatpush1.msra.mxu0 0.0
    %131 = vmatprep.mubr.f32.mxu0 0.0
    %132 = vmatmul.mubr.f32.gmra.mrb[0].mxu0 %v62
    %v133 = vpop.f32.mrb[0].mxu0
    %v134 = vadd.f32 %v58, %v133
    %v135 = vpop.f32.mrb[0].mxu0
    %136 = vmatprep.mubr.f32.mxu0 0.0
    %137 = vmatmul.mubr.f32.gmra.mrb[0].mxu0 %v65
    %v138 = vpop.f32.mrb[0].mxu0
    %v139 = vadd.f32 %v58, %v138
    %v140 = vpop.f32.mrb[0].mxu0
    %141 = vdwg.mxu0
    %142 = vst.msk [vmem:[#allocation7] sm:$0xff] %vm60, %v134
    %143 = vst.msk [vmem:[#allocation7 + $0x8] sm:$0xff] %vm60, %v139
    %146 = vrot.lane.b32.xlu0 %v134, 96
    %v147 = vpop.permute.xlu0 %146
    %148 = vrot.lane.b32.xlu0 %v139, 96
    %v149 = vpop.permute.xlu0 %148
    %152 = vst.msk [vmem:[#allocation8] sm:$0xff] %vm60, %v147
    %153 = vst.msk [vmem:[#allocation8 + $0x8] sm:$0xff] %vm60, %v149
    %154 = vrot.lane.b32.xlu0 %v134, 64
    %v155 = vpop.permute.xlu0 %154
    %156 = vrot.lane.b32.xlu0 %v139, 64
    %v157 = vpop.permute.xlu0 %156
    %160 = vst.msk [vmem:[#allocation10] sm:$0xff] %vm60, %v155
    %161 = vst.msk [vmem:[#allocation10 + $0x8] sm:$0xff] %vm60, %v157
    // Predicated region
    $region22: #{tpu_custom_call.1} parent=1 // pred_check
      _
    $region23: #{tpu_custom_call.1} parent=1 // pred_check_branch
      %163 = sbr.rel (0) target = $region25
    $region24: #{tpu_custom_call.1} parent=1 // pred_region
      %s165 = ssub.s32 256, 256
      %166 = vsyncadd [#allocation4], %s165
      %s167 = sshll.u32 [#allocation7], 4
      %s168 = int_to_ptr.vmem [resolvable:$true] %s167
      %173 = dma.vmem_to_hbm [thread:$0]  %s168, 256, %s3, [#allocation4], 128, 128, 8
    $region25: #{tpu_custom_call.1} parent=1 // pred_fallthru
      _
    // Predicated region
    $region26: #{tpu_custom_call.1} parent=1 // pred_check
      _
    $region27: #{tpu_custom_call.1} parent=1 // pred_check_branch
      %175 = sbr.rel (0) target = $region29
    $region28: #{tpu_custom_call.1} parent=1 // pred_region
      %s177 = ssub.s32 256, 256
      %178 = vsyncadd [#allocation9], %s177
      %s179 = sshll.u32 [#allocation8], 4
      %s180 = int_to_ptr.vmem [resolvable:$true] %s179
      %185 = dma.vmem_to_hbm [thread:$0]  %s180, 256, %s4, [#allocation9], 128, 128, 8
    $region29: #{tpu_custom_call.1} parent=1 // pred_fallthru
      _
    // Predicated region
    $region30: #{tpu_custom_call.1} parent=1 // pred_check
      _
    $region31: #{tpu_custom_call.1} parent=1 // pred_check_branch
      %187 = sbr.rel (0) target = $region33
    $region32: #{tpu_custom_call.1} parent=1 // pred_region
      %s189 = ssub.s32 256, 256
      %190 = vsyncadd [#allocation9], %s189
      %s191 = sshll.u32 [#allocation10], 4
      %s192 = int_to_ptr.vmem [resolvable:$true] %s191
      %197 = dma.vmem_to_hbm [thread:$0]  %s192, 256, %s5, [#allocation9], 128, 128, 8
    $region33: #{tpu_custom_call.1} parent=1 // pred_fallthru
      _
    // Predicated region
    $region34: #{tpu_custom_call.1} parent=1 // pred_check
      _
    $region35: #{tpu_custom_call.1} parent=1 // pred_check_branch
      %199 = sbr.rel (0) target = $region37
    $region36: #{tpu_custom_call.1} parent=1 // pred_region
      %200 = dma.done [#allocation4], 256
    $region37: #{tpu_custom_call.1} parent=1 // pred_fallthru
      _
    // Predicated region
    $region38: #{tpu_custom_call.1} parent=1 // pred_check
      _
    $region39: #{tpu_custom_call.1} parent=1 // pred_check_branch
      %202 = sbr.rel (0) target = $region41
    $region40: #{tpu_custom_call.1} parent=1 // pred_region
      %203 = dma.done [#allocation9], 256
    $region41: #{tpu_custom_call.1} parent=1 // pred_fallthru
      _
    // Predicated region
    $region42: #{tpu_custom_call.1} parent=1 // pred_check
      _
    $region43: #{tpu_custom_call.1} parent=1 // pred_check_branch
      %205 = sbr.rel (0) target = $region45
    $region44: #{tpu_custom_call.1} parent=1 // pred_region
      %206 = dma.done [#allocation9], 256
    $region45: #{tpu_custom_call.1} parent=1 // pred_fallthru
      _
    %207 = vsyncpa [#allocation3], 1
    %208 = vsyncpa [#allocation6], 1
    %209 = vsyncpa [#allocation4], 1
    %210 = vsyncpa [#allocation9], 1

</llo_original>
